<compile_context>
chip_gen: v7x
topology: tpu7x:2x2x1
jax: 0.10.0
libtpu: 0.0.40
codegen_flags: <defaults>
</compile_context>

<pallas_src>
import jax
import jax.numpy as jnp
from jax import lax
from jax.experimental import pallas as pl
from jax.experimental.pallas import tpu as pltpu

EPS = 1e-5  # default eps of both InstanceNorm2d and BatchNorm2d


def _ibn_kernel(x_ref, scale_ref, bias_ref, mask_ref, o_ref):
    """Fused IBN for one (tb, tc, S) block.

    mask = 1.0 for InstanceNorm channels, 0.0 for BatchNorm channels.
    scale/bias already have the BN running statistics folded in, so:
      IN rows: out = (x - mean_inst) * rsqrt(var_inst + eps) * in_w + in_b
      BN rows: out = x * (bn_w * rsqrt(rvar + eps)) + (bn_b - rmean * ...)
    expressed as one branch-free formula.
    """
    x = x_ref[...].astype(jnp.float32)                      # [tb, tc, S]
    m = mask_ref[...]                                       # [tc, 1]
    mean = jnp.mean(x, axis=2, keepdims=True)               # [tb, tc, 1]
    xc = x - m * mean                # centered for IN rows, raw x for BN rows
    var = jnp.mean(xc * xc, axis=2, keepdims=True)          # [tb, tc, 1]
    inv = lax.rsqrt(var + EPS)                               # used on IN rows
    mul = (m * (inv - 1.0) + 1.0) * scale_ref[...]          # [tb, tc, 1]
    o_ref[...] = (xc * mul + bias_ref[...]).astype(o_ref.dtype)


def _choose_channel_tile(c, s, elem_bytes, sub_mult, target_bytes):
    """Largest divisor of c that is a multiple of sub_mult (or c itself) whose
    (tc, S) slab stays under target_bytes; correctness-safe fallback."""
    cands = [d for d in range(sub_mult, c + 1, sub_mult) if c % d == 0]
    if not cands:
        return c  # block dim equal to full array dim is always legal
    fitting = [d for d in cands if d * s * elem_bytes <= target_bytes]
    return max(fitting) if fitting else min(cands)


def _choose_batch_tile(n, per_image_bytes, target_bytes):
    cands = [d for d in range(1, n + 1) if n % d == 0]
    fitting = [d for d in cands if d * per_image_bytes <= target_bytes]
    return max(fitting) if fitting else 1


def ibn_forward(x, in_weight, in_bias, bn_weight, bn_bias, bn_running_mean,
                bn_running_var, *, target_block_bytes=2 * 1024 * 1024):
    """IBN.forward: x [N, C, H, W] -> [N, C, H, W] (same dtype as x)."""
    n, c, h, w = x.shape
    half = c // 2
    s = h * w
    elem = jnp.dtype(x.dtype).itemsize
    sub_mult = max(8, 32 // elem)        # 8 (f32), 16 (bf16), 32 (int8)

    # ~2 MiB input blocks: in+out double-buffered ~= 8 MiB, inside the default
    # scoped-VMEM budget on v5e (16 MiB), v6e (32 MiB) and v7x (32 MiB).
    tc = _choose_channel_tile(c, s, elem, sub_mult, target_block_bytes)
    tb = _choose_batch_tile(n, tc * s * elem, target_block_bytes)

    f32 = jnp.float32
    in_w = jnp.asarray(in_weight, f32)
    in_b = jnp.asarray(in_bias, f32)
    bn_inv = lax.rsqrt(jnp.asarray(bn_running_var, f32) + EPS)
    bn_scale = jnp.asarray(bn_weight, f32) * bn_inv
    bn_shift = jnp.asarray(bn_bias, f32) - jnp.asarray(bn_running_mean,
                                                       f32) * bn_scale
    scale = jnp.concatenate([in_w, bn_scale]).reshape(c, 1)
    bias = jnp.concatenate([in_b, bn_shift]).reshape(c, 1)
    mask = (jnp.arange(c, dtype=jnp.int32) < half).astype(f32).reshape(c, 1)

    x3 = x.reshape(n, c, s)              # native dtype, no cast in the wrapper

    grid = (n // tb, c // tc)
    data_spec = pl.BlockSpec((tb, tc, s), lambda i, j: (i, j, 0))
    param_spec = pl.BlockSpec((tc, 1), lambda i, j: (j, 0))

    cost = pl.CostEstimate(
        flops=8 * n * c * s,
        transcendentals=n * c,
        bytes_accessed=2 * n * c * s * elem + 3 * c * 4,
    )

    out = pl.pallas_call(
        _ibn_kernel,
        out_shape=jax.ShapeDtypeStruct((n, c, s), x.dtype),
        grid=grid,
        in_specs=[data_spec, param_spec, param_spec, param_spec],
        out_specs=data_spec,
        compiler_params=pltpu.CompilerParams(
            dimension_semantics=("parallel", "parallel")),
        cost_estimate=cost,
    )(x3, scale, bias, mask)
    return out.reshape(n, c, h, w)


def ibn_reference(x, in_weight, in_bias, bn_weight, bn_bias, bn_running_mean,
                  bn_running_var):
    """Pure-JAX reference of the PyTorch IBN forward (eval mode)."""
    n, c, h, w = x.shape
    half = c // 2
    xf = x.astype(jnp.float32)
    x1 = xf[:, :half]
    mean = x1.mean(axis=(2, 3), keepdims=True)
    var = x1.var(axis=(2, 3), keepdims=True)          # biased, as in PyTorch IN
    y1 = ((x1 - mean) / jnp.sqrt(var + EPS)
          * in_weight.reshape(1, half, 1, 1) + in_bias.reshape(1, half, 1, 1))
    x2 = xf[:, half:]
    rm = bn_running_mean.reshape(1, -1, 1, 1)
    rv = bn_running_var.reshape(1, -1, 1, 1)
    y2 = ((x2 - rm) / jnp.sqrt(rv + EPS)
          * bn_weight.reshape(1, -1, 1, 1) + bn_bias.reshape(1, -1, 1, 1))
    return jnp.concatenate([y1, y2], axis=1).astype(x.dtype)


if __name__ == "__main__":
    N, C, H, W = 2, 8, 16, 16
    half = C // 2
    key = jax.random.PRNGKey(0)
    kx, k1, k2, k3, k4, k5, k6 = jax.random.split(key, 7)

    x = jax.random.normal(kx, (N, C, H, W), jnp.float32)
    in_weight = 1.0 + 0.1 * jax.random.normal(k1, (half,), jnp.float32)
    in_bias = 0.1 * jax.random.normal(k2, (half,), jnp.float32)
    bn_weight = 1.0 + 0.1 * jax.random.normal(k3, (C - half,), jnp.float32)
    bn_bias = 0.1 * jax.random.normal(k4, (C - half,), jnp.float32)
    bn_running_mean = 0.1 * jax.random.normal(k5, (C - half,), jnp.float32)
    bn_running_var = jax.random.uniform(k6, (C - half,), jnp.float32, 0.5, 1.5)

    out = ibn_forward(x, in_weight, in_bias, bn_weight, bn_bias,
                      bn_running_mean, bn_running_var)
    out = jax.block_until_ready(out)

    ref = ibn_reference(x, in_weight, in_bias, bn_weight, bn_bias,
                        bn_running_mean, bn_running_var)
    assert out.shape == (N, C, H, W)
    assert out.dtype == x.dtype
    assert bool(jnp.all(jnp.isfinite(out)))
    assert bool(jnp.allclose(out, ref, atol=1e-4, rtol=1e-4))
    print("KERNEL_OK")
</pallas_src>

<mosaic_0001>
module attributes {stable_mosaic.version = 11 : i64} {
  func.func @_ibn_kernel(%arg0: i32, %arg1: i32, %arg2: memref<2x8x256xf32, #tpu.memory_space<vmem>>, %arg3: memref<8x1xf32, #tpu.memory_space<vmem>>, %arg4: memref<8x1xf32, #tpu.memory_space<vmem>>, %arg5: memref<8x1xf32, #tpu.memory_space<vmem>>, %arg6: memref<2x8x256xf32, #tpu.memory_space<vmem>>) attributes {dimension_semantics = [#tpu.dimension_semantics<parallel>, #tpu.dimension_semantics<parallel>], iteration_bounds = array<i64: 1, 1>, scalar_prefetch = 0 : i64, scratch_operands = 0 : i64, tpu.core_type = #tpu.core_type<tc>, window_params = [{transform_indices = @transform_0, window_bounds = array<i64: 2, 8, 256>}, {transform_indices = @transform_1, window_bounds = array<i64: 8, 1>}, {transform_indices = @transform_2, window_bounds = array<i64: 8, 1>}, {transform_indices = @transform_3, window_bounds = array<i64: 8, 1>}, {transform_indices = @transform_4, window_bounds = array<i64: 2, 8, 256>}]} {
    %c0 = arith.constant 0 : index
    %c0_0 = arith.constant 0 : index
    %c0_1 = arith.constant 0 : index
    %0 = vector.load %arg2[%c0, %c0_0, %c0_1] : memref<2x8x256xf32, #tpu.memory_space<vmem>>, vector<2x8x256xf32>
    %c0_2 = arith.constant 0 : index
    %c0_3 = arith.constant 0 : index
    %1 = vector.load %arg5[%c0_2, %c0_3] : memref<8x1xf32, #tpu.memory_space<vmem>>, vector<8x1xf32>
    %cst = arith.constant dense<0.000000e+00> : vector<2x8xf32>
    %2 = vector.multi_reduction <add>, %0, %cst [2] : vector<2x8x256xf32> to vector<2x8xf32>
    %3 = vector.shape_cast %2 : vector<2x8xf32> to vector<2x8x1xf32>
    %cst_4 = arith.constant 2.560000e+02 : f32
    %4 = vector.broadcast %cst_4 : f32 to vector<2x8x1xf32>
    %5 = arith.divf %3, %4 : vector<2x8x1xf32>
    %6 = vector.shape_cast %1 : vector<8x1xf32> to vector<1x8x1xf32>
    %7 = vector.broadcast %6 : vector<1x8x1xf32> to vector<2x8x1xf32>
    %8 = arith.mulf %7, %5 : vector<2x8x1xf32>
    %9 = vector.broadcast %8 : vector<2x8x1xf32> to vector<2x8x256xf32>
    %10 = arith.subf %0, %9 : vector<2x8x256xf32>
    %11 = arith.mulf %10, %10 : vector<2x8x256xf32>
    %cst_5 = arith.constant dense<0.000000e+00> : vector<2x8xf32>
    %12 = vector.multi_reduction <add>, %11, %cst_5 [2] : vector<2x8x256xf32> to vector<2x8xf32>
    %13 = vector.shape_cast %12 : vector<2x8xf32> to vector<2x8x1xf32>
    %cst_6 = arith.constant 2.560000e+02 : f32
    %14 = vector.broadcast %cst_6 : f32 to vector<2x8x1xf32>
    %15 = arith.divf %13, %14 : vector<2x8x1xf32>
    %cst_7 = arith.constant 9.99999974E-6 : f32
    %16 = vector.broadcast %cst_7 : f32 to vector<2x8x1xf32>
    %17 = arith.addf %15, %16 : vector<2x8x1xf32>
    %18 = math.rsqrt %17 : vector<2x8x1xf32>
    %cst_8 = arith.constant 1.000000e+00 : f32
    %19 = vector.broadcast %cst_8 : f32 to vector<2x8x1xf32>
    %20 = arith.subf %18, %19 : vector<2x8x1xf32>
    %21 = vector.shape_cast %1 : vector<8x1xf32> to vector<1x8x1xf32>
    %22 = vector.broadcast %21 : vector<1x8x1xf32> to vector<2x8x1xf32>
    %23 = arith.mulf %22, %20 : vector<2x8x1xf32>
    %cst_9 = arith.constant 1.000000e+00 : f32
    %24 = vector.broadcast %cst_9 : f32 to vector<2x8x1xf32>
    %25 = arith.addf %23, %24 : vector<2x8x1xf32>
    %c0_10 = arith.constant 0 : index
    %c0_11 = arith.constant 0 : index
    %26 = vector.load %arg3[%c0_10, %c0_11] : memref<8x1xf32, #tpu.memory_space<vmem>>, vector<8x1xf32>
    %27 = vector.shape_cast %26 : vector<8x1xf32> to vector<1x8x1xf32>
    %28 = vector.broadcast %27 : vector<1x8x1xf32> to vector<2x8x1xf32>
    %29 = arith.mulf %25, %28 : vector<2x8x1xf32>
    %30 = vector.broadcast %29 : vector<2x8x1xf32> to vector<2x8x256xf32>
    %31 = arith.mulf %10, %30 : vector<2x8x256xf32>
    %c0_12 = arith.constant 0 : index
    %c0_13 = arith.constant 0 : index
    %32 = vector.load %arg4[%c0_12, %c0_13] : memref<8x1xf32, #tpu.memory_space<vmem>>, vector<8x1xf32>
    %33 = vector.shape_cast %32 : vector<8x1xf32> to vector<1x8x1xf32>
    %34 = vector.broadcast %33 : vector<1x8x1xf32> to vector<2x8x256xf32>
    %35 = arith.addf %31, %34 : vector<2x8x256xf32>
    %c0_14 = arith.constant 0 : index
    %c0_15 = arith.constant 0 : index
    %c0_16 = arith.constant 0 : index
    %36 = vector.load %arg6[%c0_14, %c0_15, %c0_16] : memref<2x8x256xf32, #tpu.memory_space<vmem>>, vector<2x8x256xf32>
    tpu.vector_store %arg6[%c0_14, %c0_15, %c0_16], %35 {strides = array<i32>} : memref<2x8x256xf32, #tpu.memory_space<vmem>>, vector<2x8x256xf32>,
    return
  }
  func.func @transform_0(%arg0: i32, %arg1: i32) -> (i32, i32, i32) {
    %c0_i32 = arith.constant 0 : i32
    %c0_i32_0 = arith.constant 0 : i32
    return %arg0, %arg1, %c0_i32 : i32, i32, i32
  }
  func.func @transform_1(%arg0: i32, %arg1: i32) -> (i32, i32) {
    %c0_i32 = arith.constant 0 : i32
    %c0_i32_0 = arith.constant 0 : i32
    return %arg1, %c0_i32 : i32, i32
  }
  func.func @transform_2(%arg0: i32, %arg1: i32) -> (i32, i32) {
    %c0_i32 = arith.constant 0 : i32
    %c0_i32_0 = arith.constant 0 : i32
    return %arg1, %c0_i32 : i32, i32
  }
  func.func @transform_3(%arg0: i32, %arg1: i32) -> (i32, i32) {
    %c0_i32 = arith.constant 0 : i32
    %c0_i32_0 = arith.constant 0 : i32
    return %arg1, %c0_i32 : i32, i32
  }
  func.func @transform_4(%arg0: i32, %arg1: i32) -> (i32, i32, i32) {
    %c0_i32 = arith.constant 0 : i32
    %c0_i32_0 = arith.constant 0 : i32
    return %arg0, %arg1, %c0_i32 : i32, i32, i32
  }
}

</mosaic_0001>

<llo_original>
// kernel: tpu_custom_call.1
$region0: #{tpu_custom_call.1}
  #allocation0 [shape = 'u32[]', space=smem, size = 0x4, offset = 0x4, fixed_abs, tag = 'smem constant byte address 0x4 - core index']
  #allocation1 [shape = 'u32[144,128]{1,0:T(1,128)}', space=vmem, size = 0x12000, scoped, tag = 'internal scratch']
  %s0 = inlined_call_operand.hbm [shape: f32[2,8,256], index: 0, kind: input, shape index: {}]
  %s1 = inlined_call_operand.vmem [shape: f32[8,1], index: 1, kind: input, shape index: {}]
  %s2 = inlined_call_operand.vmem [shape: f32[8,1], index: 2, kind: input, shape index: {}]
  %s3 = inlined_call_operand.vmem [shape: f32[8,1], index: 3, kind: input, shape index: {}]
  %s4 = inlined_call_operand.hbm [shape: f32[2,8,256], index: 4, kind: output, shape index: {}]
  %s5 = sld [smem:[#allocation0]]
  $region30: #{tpu_custom_call.1} parent=0
    _
  %s7 = ssub.s32 1, %s5
  %s8 = scalar_select 0, %s7, %s5
  $region1: #{tpu_custom_call.1} parent=0
    #allocation2 [shape = 'u8[16384]{0}', space=vmem, size = 0x4000, scoped, tag = 'input window, operand 0, single buffered']
    #allocation3 [shape = 's32[1]{0}', space=sflag, size = 0x4, scoped, tag = 'scoped memory for tpu_custom_call.1']
    #allocation4 [shape = 's32[1]{0}', space=sflag, size = 0x4, scoped, tag = 'scoped memory for tpu_custom_call.1']
    #allocation5 [shape = 'u8[16384]{0}', space=vmem, size = 0x4000, scoped, tag = 'output window, operand 0, single buffered']
    %9 = vsyncpa [#allocation3], 0
    %10 = vsyncpa [#allocation4], 0
    // Predicated region
    $region2: #{tpu_custom_call.1} parent=1 // pred_check
      _
    $region3: #{tpu_custom_call.1} parent=1 // pred_check_branch
      %12 = sbr.rel (0) target = $region5
    $region4: #{tpu_custom_call.1} parent=1 // pred_region
      %s14 = ssub.s32 512, 512
      %15 = vsyncadd [#allocation3], %s14
      %s16 = sshll.u32 [#allocation2], 4
      %s17 = int_to_ptr.vmem [resolvable:$true] %s16
      %22 = dma.hbm_to_vmem [thread:$0]  %s0, 512, %s17, [#allocation3], 256, 256, 16
    $region5: #{tpu_custom_call.1} parent=1 // pred_fallthru
      _
    // Predicated region
    $region6: #{tpu_custom_call.1} parent=1 // pred_check
      _
    $region7: #{tpu_custom_call.1} parent=1 // pred_check_branch
      %24 = sbr.rel (0) target = $region9
    $region8: #{tpu_custom_call.1} parent=1 // pred_region
      _
    $region9: #{tpu_custom_call.1} parent=1 // pred_fallthru
      _
    // Predicated region
    $region10: #{tpu_custom_call.1} parent=1 // pred_check
      _
    $region11: #{tpu_custom_call.1} parent=1 // pred_check_branch
      %26 = sbr.rel (0) target = $region13
    $region12: #{tpu_custom_call.1} parent=1 // pred_region
      _
    $region13: #{tpu_custom_call.1} parent=1 // pred_fallthru
      _
    // Predicated region
    $region14: #{tpu_custom_call.1} parent=1 // pred_check
      _
    $region15: #{tpu_custom_call.1} parent=1 // pred_check_branch
      %28 = sbr.rel (0) target = $region17
    $region16: #{tpu_custom_call.1} parent=1 // pred_region
      _
    $region17: #{tpu_custom_call.1} parent=1 // pred_fallthru
      _
    // Predicated region
    $region18: #{tpu_custom_call.1} parent=1 // pred_check
      _
    $region19: #{tpu_custom_call.1} parent=1 // pred_check_branch
      %30 = sbr.rel (0) target = $region21
    $region20: #{tpu_custom_call.1} parent=1 // pred_region
      %31 = dma.done [#allocation3], 512
    $region21: #{tpu_custom_call.1} parent=1 // pred_fallthru
      _
    %v32 = vld [vmem:[#allocation2] sm:$0xff]
    %v33 = vld [vmem:[#allocation2 + $0x8] sm:$0xff]
    %v34 = vld [vmem:[#allocation2 + $0x10] sm:$0xff]
    %v35 = vld [vmem:[#allocation2 + $0x18] sm:$0xff]
    %v36 = vld [vmem:[%s3] sm:$0xff]
    %v37 = vadd.f32 %v32, %v33
    %38 = vadd.xlane.f32.xlu0 %v37
    %v39 = vpop.xlane.xlu0 %38
    %v40 = vadd.f32 %v34, %v35
    %41 = vadd.xlane.f32.xlu0 %v40
    %v42 = vpop.xlane.xlu0 %41
    %v43 = vrcp.pop 256.0
    %v44 = vmul.f32 %v39, %v43
    %v45 = vmul.f32 %v42, %v43
    %v46 = vmul.f32 %v36, %v44
    %v47 = vmul.f32 %v36, %v45
    %49 = vset.pattern.permute.xlu0 0
    %50 = vperm.xlu0 %49, %v46
    %v51 = vpop.permute.xlu0 %50
    %54 = vset.pattern.permute.xlu0 0
    %55 = vperm.xlu0 %54, %v47
    %v56 = vpop.permute.xlu0 %55
    %v58 = vsub.f32 %v32, %v51
    %v59 = vsub.f32 %v33, %v51
    %v60 = vsub.f32 %v34, %v56
    %v61 = vsub.f32 %v35, %v56
    %v62 = vmul.f32 %v58, %v58
    %v63 = vmul.f32 %v59, %v59
    %v64 = vmul.f32 %v60, %v60
    %v65 = vmul.f32 %v61, %v61
    %v66 = vadd.f32 %v62, %v63
    %67 = vadd.xlane.f32.xlu0 %v66
    %v68 = vpop.xlane.xlu0 %67
    %v69 = vadd.f32 %v64, %v65
    %70 = vadd.xlane.f32.xlu0 %v69
    %v71 = vpop.xlane.xlu0 %70
    %v72 = vmul.f32 %v68, %v43
    %v73 = vmul.f32 %v71, %v43
    %v74 = vadd.f32 %v72, 1e-05
    %v75 = vadd.f32 %v73, 1e-05
    %v76 = vrsqrt.pop %v74
    %v77 = vrsqrt.pop %v75
    %v78 = vsub.f32 %v76, 1.0
    %v79 = vsub.f32 %v77, 1.0
    %v80 = vmul.f32 %v36, %v78
    %v81 = vmul.f32 %v36, %v79
    %v82 = vadd.f32 %v80, 1.0
    %v83 = vadd.f32 %v81, 1.0
    %v84 = vld [vmem:[%s1] sm:$0xff]
    %v85 = vmul.f32 %v82, %v84
    %v86 = vmul.f32 %v83, %v84
    %88 = vset.pattern.permute.xlu0 0
    %89 = vperm.xlu0 %88, %v85
    %v90 = vpop.permute.xlu0 %89
    %93 = vset.pattern.permute.xlu0 0
    %94 = vperm.xlu0 %93, %v86
    %v95 = vpop.permute.xlu0 %94
    %v97 = vmul.f32 %v58, %v90
    %v98 = vmul.f32 %v59, %v90
    %v99 = vmul.f32 %v60, %v95
    %v100 = vmul.f32 %v61, %v95
    %v101 = vld [vmem:[%s2] sm:$0xff]
    %103 = vset.pattern.permute.xlu0 0
    %104 = vperm.xlu0 %103, %v101
    %v105 = vpop.permute.xlu0 %104
    %v107 = vadd.f32 %v97, %v105
    %v108 = vadd.f32 %v98, %v105
    %v109 = vadd.f32 %v99, %v105
    %v110 = vadd.f32 %v100, %v105
    %111 = vst [vmem:[#allocation5] sm:$0xff] %v107
    %112 = vst [vmem:[#allocation5 + $0x8] sm:$0xff] %v108
    %113 = vst [vmem:[#allocation5 + $0x10] sm:$0xff] %v109
    %114 = vst [vmem:[#allocation5 + $0x18] sm:$0xff] %v110
    // Predicated region
    $region22: #{tpu_custom_call.1} parent=1 // pred_check
      _
    $region23: #{tpu_custom_call.1} parent=1 // pred_check_branch
      %116 = sbr.rel (0) target = $region25
    $region24: #{tpu_custom_call.1} parent=1 // pred_region
      %s118 = ssub.s32 512, 512
      %119 = vsyncadd [#allocation4], %s118
      %s120 = sshll.u32 [#allocation5], 4
      %s121 = int_to_ptr.vmem [resolvable:$true] %s120
      %126 = dma.vmem_to_hbm [thread:$0]  %s121, 512, %s4, [#allocation4], 256, 256, 16
    $region25: #{tpu_custom_call.1} parent=1 // pred_fallthru
      _
    // Predicated region
    $region26: #{tpu_custom_call.1} parent=1 // pred_check
      _
    $region27: #{tpu_custom_call.1} parent=1 // pred_check_branch
      %128 = sbr.rel (0) target = $region29
    $region28: #{tpu_custom_call.1} parent=1 // pred_region
      %129 = dma.done [#allocation4], 512
    $region29: #{tpu_custom_call.1} parent=1 // pred_fallthru
      _
    %130 = vsyncpa [#allocation3], 1
    %131 = vsyncpa [#allocation4], 1

</llo_original>
